<compile_context>
chip_gen: v5e
topology: v5e:2x2
jax: 0.10.0
libtpu: 0.0.40
codegen_flags: <defaults>
</compile_context>

<pallas_src>
import jax
import jax.numpy as jnp
from jax.experimental import pallas as pl
from jax.experimental.pallas import tpu as pltpu


def _round_up(x, m):
    return ((x + m - 1) // m) * m


# ----------------------------------------------------------------------------
# Kernels
# ----------------------------------------------------------------------------
def _nddr_stats_kernel(f1_ref, f2_ref, wl_ref, wr_ref, sum_ref, sumsq_ref):
    """Pass 1: lane-dense per-channel sum / sum-of-squares of the fused conv output.

    f1_ref, f2_ref : [1, C, TP]     feature tiles (NCHW layout, spatial on lanes)
    wl_ref, wr_ref : [2Cp, C]       fused conv weights (branch1 rows, then branch2)
    sum_ref, sumsq : [1, 2Cp, 128]  per-batch-slot resident accumulators
    """
    # Per-slot init (slot == batch index): stays correct when the batch axis is
    # sharded across TensorCores (v7x megacore).
    @pl.when(pl.program_id(1) == 0)
    def _init():
        sum_ref[...] = jnp.zeros_like(sum_ref)
        sumsq_ref[...] = jnp.zeros_like(sumsq_ref)

    y = (jnp.dot(wl_ref[...], f1_ref[0], preferred_element_type=jnp.float32)
         + jnp.dot(wr_ref[...], f2_ref[0], preferred_element_type=jnp.float32))

    # Lane-dense accumulation: fold the spatial tile down to 128 lanes with plain
    # VPU adds over 128-aligned static slices -- no cross-lane XLU reduce and no
    # masked single-lane stores.  (Accumulating sum(y) here costs the same VPU
    # work as accumulating input row-sums + W @ sum(x) in the glue, so both stats
    # are fused into one chunk loop.)
    n_chunks = y.shape[1] // 128
    c0 = y[:, 0:128]
    s_part = c0
    q_part = c0 * c0
    for i in range(1, n_chunks):
        c = y[:, i * 128:(i + 1) * 128]
        s_part = s_part + c
        q_part = q_part + c * c
    sum_ref[0] += s_part
    sumsq_ref[0] += q_part


def _nddr_norm_kernel(f1_ref, f2_ref, wl_ref, wr_ref, t_ref, o1_ref, o2_ref):
    """Pass 2: conv with BN scale folded into the weights, + shift, + ReLU.

    wl_ref, wr_ref : [2Cp, C]     BN-scale-folded weights
    t_ref          : [2Cp, 1]     per-channel shift (beta - mean * scale)
    o1_ref, o2_ref : [1, Cp, TP]  outputs in NCHW layout (spatial lane-dense)
    """
    Cp = o1_ref.shape[1]
    y = (jnp.dot(wl_ref[...], f1_ref[0], preferred_element_type=jnp.float32)
         + jnp.dot(wr_ref[...], f2_ref[0], preferred_element_type=jnp.float32))
    y = jnp.maximum(y + t_ref[...], 0.0)
    # Cp is a multiple of 8 -> both row slices are sublane-aligned store streams.
    o1_ref[0] = y[:Cp, :].astype(o1_ref.dtype)
    o2_ref[0] = y[Cp:, :].astype(o2_ref.dtype)


# ----------------------------------------------------------------------------
# Generation-aware sizing helpers
# ----------------------------------------------------------------------------
def _vmem_capacity_bytes():
    """Physical VMEM per TensorCore (128 MiB v5e/v6e, 64 MiB v7x); safe fallback."""
    try:
        info = pltpu.get_tpu_info()
        cap = int(getattr(info, "vmem_capacity_bytes", 0))
        if cap > 0:
            return cap
    except Exception:
        pass
    return 64 * 1024 * 1024


def _pick_spatial_tile(P_pad, C, Cp, budget_bytes, max_tile=4096):
    """Largest multiple of 128 that divides P_pad, is <= max_tile, and keeps the
    pass-2 double-buffered working set (2 feature + 2 output blocks, 2 buffers
    each, plus resident weights) within budget."""
    weight_bytes = 2 * (2 * Cp * C * 4) * 2 + 2 * Cp * 4 * 2  # wl+wr (x2 buffers) + t
    best = 128
    t = 128
    while t <= min(P_pad, max_tile):
        if P_pad % t == 0:
            work = 2 * (2 * C + 2 * Cp) * 4 * t + weight_bytes
            if work <= budget_bytes:
                best = t
        t += 128
    return best


# ----------------------------------------------------------------------------
# Wrapper
# ----------------------------------------------------------------------------
def nddr_forward(feature1, feature2, w1, w2, gamma1, beta1, gamma2, beta2,
                 eps=1e-3):
    """feature1, feature2: NCHW float32 arrays [N, C, H, W].
    w1, w2: [C, 2C] conv weight matrices (out_channels, in_channels).
    Returns (out1, out2) in NCHW, matching the PyTorch module forward."""
    N, C, H, W = feature1.shape
    P = H * W
    M = N * P                                    # true per-channel element count

    Cp = _round_up(C, 8)                         # sublane-aligned branch split
    Pp = _round_up(P, 128)                       # lane-aligned spatial tiles

    # Free reshape (NCHW is already [N, C, H*W] contiguous); pad spatial only if
    # needed (padded columns produce y == 0, so sums/sumsq stay exact).
    f1 = feature1.reshape(N, C, P).astype(jnp.float32)
    f2 = feature2.reshape(N, C, P).astype(jnp.float32)
    if Pp != P:
        f1 = jnp.pad(f1, ((0, 0), (0, 0), (0, Pp - P)))
        f2 = jnp.pad(f2, ((0, 0), (0, 0), (0, Pp - P)))

    def _pad_rows(w):                            # [C, 2C] -> [Cp, 2C] (zero rows)
        w = w.astype(jnp.float32)
        if Cp == C:
            return w
        return jnp.concatenate([w, jnp.zeros((Cp - C, 2 * C), jnp.float32)], axis=0)

    def _pad_vec(v, fill):
        v = v.astype(jnp.float32)
        if Cp == C:
            return v
        return jnp.concatenate([v, jnp.full((Cp - C,), fill, jnp.float32)])

    # Fuse both branches: rows [0, Cp) = branch1 output channels, [Cp, 2Cp) = branch2.
    wf = jnp.concatenate([_pad_rows(w1), _pad_rows(w2)], axis=0)   # [2Cp, 2C]
    wl = wf[:, :C]                                                 # multiplies feature1
    wr = wf[:, C:]                                                 # multiplies feature2
    gamma = jnp.concatenate([_pad_vec(gamma1, 1.0), _pad_vec(gamma2, 1.0)])
    beta = jnp.concatenate([_pad_vec(beta1, 0.0), _pad_vec(beta2, 0.0)])

    # Generation-aware VMEM budget / spatial tile (v5e/v6e: ~96 MiB limit, big
    # tiles; v7x: ~48 MiB limit, tiles capped so the working set fits 64 MiB).
    vmem_phys = _vmem_capacity_bytes()
    vmem_limit = max(32 * 1024 * 1024, min(int(vmem_phys * 0.75), 96 * 1024 * 1024))
    tile_p = _pick_spatial_tile(Pp, C, Cp, int(0.7 * vmem_limit))
    n_p = Pp // tile_p
    cparams_kwargs = dict(vmem_limit_bytes=vmem_limit)

    feat_spec = pl.BlockSpec((1, C, tile_p), lambda n, p: (n, 0, p))
    out_spec = pl.BlockSpec((1, Cp, tile_p), lambda n, p: (n, 0, p))
    # TODO(synk): single-buffer these grid-invariant operands (pipeline_mode=
    # pl.Buffered(1)) once verified on the deployed jax version; their
    # double-buffered footprint is already charged to the tile budget above.
    w_spec = pl.BlockSpec((2 * Cp, C), lambda n, p: (0, 0))            # resident
    t_spec = pl.BlockSpec((2 * Cp, 1), lambda n, p: (0, 0))            # resident
    acc_spec = pl.BlockSpec((1, 2 * Cp, 128), lambda n, p: (n, 0, 0))  # per-batch slot

    # ---- Pass 1: lane-dense per-channel sum & sum-of-squares of the conv output
    ch_sum, ch_sumsq = pl.pallas_call(
        _nddr_stats_kernel,
        out_shape=(jax.ShapeDtypeStruct((N, 2 * Cp, 128), jnp.float32),
                   jax.ShapeDtypeStruct((N, 2 * Cp, 128), jnp.float32)),
        grid_spec=pltpu.PrefetchScalarGridSpec(
            num_scalar_prefetch=0,
            grid=(N, n_p),
            in_specs=[feat_spec, feat_spec, w_spec, w_spec],
            out_specs=(acc_spec, acc_spec)),
        compiler_params=pltpu.CompilerParams(
            # Batch axis owns independent accumulator slots -> 'parallel'
            # (v7x megacore can shard it); spatial axis carries the accumulation.
            dimension_semantics=("parallel", "arbitrary"),
            **cparams_kwargs),
    )(f1, f2, wl, wr)

    # ---- Phase boundary (tiny per-channel glue): fold BN affine into weights --
    ch_sum = jnp.sum(ch_sum, axis=(0, 2))           # [2Cp]
    ch_sumsq = jnp.sum(ch_sumsq, axis=(0, 2))       # [2Cp]
    mean = ch_sum / M
    var = jnp.maximum(ch_sumsq / M - mean * mean, 0.0)   # biased var (train-mode BN)
    # TODO(synk): if per-channel means are huge vs std, accumulate (y - c)^2 with a
    # per-channel shift c to avoid E[y^2]-E[y]^2 cancellation at 1e-4 tolerance.
    s = gamma * jax.lax.rsqrt(var + eps)            # [2Cp] per-channel scale
    t = (beta - mean * s).reshape(2 * Cp, 1)        # [2Cp, 1] per-channel shift
    wl_s = wl * s[:, None]
    wr_s = wr * s[:, None]

    # ---- Pass 2: normalize (folded affine) + ReLU, write NCHW outputs ---------
    out1, out2 = pl.pallas_call(
        _nddr_norm_kernel,
        out_shape=(jax.ShapeDtypeStruct((N, Cp, Pp), jnp.float32),
                   jax.ShapeDtypeStruct((N, Cp, Pp), jnp.float32)),
        grid_spec=pltpu.PrefetchScalarGridSpec(
            num_scalar_prefetch=0,
            grid=(N, n_p),
            in_specs=[feat_spec, feat_spec, w_spec, w_spec, t_spec],
            out_specs=(out_spec, out_spec)),
        compiler_params=pltpu.CompilerParams(
            dimension_semantics=("parallel", "parallel"),   # megacore-friendly
            **cparams_kwargs),
    )(f1, f2, wl_s, wr_s, t)

    out1 = out1[:, :C, :P].reshape(N, C, H, W)
    out2 = out2[:, :C, :P].reshape(N, C, H, W)
    return out1, out2


def make_nddr_params(out_channels, init_weights=(0.9, 0.1)):
    """Deterministic parameter construction mirroring NDDR.__init__."""
    C = out_channels
    a, b = init_weights
    eye = jnp.eye(C, dtype=jnp.float32)
    # conv weight shape in torch: [C, 2C, 1, 1] -> here [C, 2C]
    w1 = jnp.concatenate([eye * a, eye * b], axis=1)
    w2 = jnp.concatenate([eye * b, eye * a], axis=1)
    gamma1 = jnp.ones((C,), jnp.float32)
    beta1 = jnp.zeros((C,), jnp.float32)
    gamma2 = jnp.ones((C,), jnp.float32)
    beta2 = jnp.zeros((C,), jnp.float32)
    return w1, w2, gamma1, beta1, gamma2, beta2


if __name__ == "__main__":
    N, C, H, W = 2, 4, 16, 16
    key = jax.random.PRNGKey(0)
    k1, k2 = jax.random.split(key)
    feature1 = jax.random.normal(k1, (N, C, H, W), dtype=jnp.float32)
    feature2 = jax.random.normal(k2, (N, C, H, W), dtype=jnp.float32)

    params = make_nddr_params(C, init_weights=(0.9, 0.1))

    out1, out2 = nddr_forward(feature1, feature2, *params)
    out1 = jax.block_until_ready(out1)
    out2 = jax.block_until_ready(out2)

    # Pure-JAX reference of the same math (PyTorch train-mode BN semantics).
    def ref(f1, f2, w1, w2, g1, b1, g2, b2, eps=1e-3):
        x = jnp.concatenate([f1, f2], axis=1)             # [N, 2C, H, W]

        def branch(w, g, bb):
            y = jnp.einsum('nchw,oc->nohw', x, w)
            mean = jnp.mean(y, axis=(0, 2, 3), keepdims=True)
            var = jnp.mean((y - mean) ** 2, axis=(0, 2, 3), keepdims=True)
            yn = (y - mean) / jnp.sqrt(var + eps) * g[None, :, None, None] \
                 + bb[None, :, None, None]
            return jnp.maximum(yn, 0.0)

        return branch(w1, g1, b1), branch(w2, g2, b2)

    r1, r2 = ref(feature1, feature2, *params)
    assert jnp.allclose(out1, r1, atol=1e-4, rtol=1e-4)
    assert jnp.allclose(out2, r2, atol=1e-4, rtol=1e-4)

    print("KERNEL_OK")
</pallas_src>

<mosaic_0001>
module attributes {stable_mosaic.version = 11 : i64} {
  func.func @_nddr_stats_kernel(%arg0: i32, %arg1: i32, %arg2: memref<1x4x256xf32, #tpu.memory_space<vmem>>, %arg3: memref<1x4x256xf32, #tpu.memory_space<vmem>>, %arg4: memref<16x4xf32, #tpu.memory_space<vmem>>, %arg5: memref<16x4xf32, #tpu.memory_space<vmem>>, %arg6: memref<1x16x128xf32, #tpu.memory_space<vmem>>, %arg7: memref<1x16x128xf32, #tpu.memory_space<vmem>>) attributes {dimension_semantics = [#tpu.dimension_semantics<parallel>, #tpu.dimension_semantics<arbitrary>], iteration_bounds = array<i64: 2, 1>, scalar_prefetch = 0 : i64, scratch_operands = 0 : i64, tpu.core_type = #tpu.core_type<tc>, window_params = [{transform_indices = @transform_0, window_bounds = array<i64: 1, 4, 256>}, {transform_indices = @transform_1, window_bounds = array<i64: 1, 4, 256>}, {pipeline_mode = #tpu.pipeline_mode<synchronous>, transform_indices = @transform_2, window_bounds = array<i64: 16, 4>}, {pipeline_mode = #tpu.pipeline_mode<synchronous>, transform_indices = @transform_3, window_bounds = array<i64: 16, 4>}, {transform_indices = @transform_4, window_bounds = array<i64: 1, 16, 128>}, {transform_indices = @transform_5, window_bounds = array<i64: 1, 16, 128>}]} {
    %c0_i32 = arith.constant 0 : i32
    %0 = arith.cmpi eq, %arg1, %c0_i32 : i32
    %1 = arith.extui %0 : i1 to i32
    %c0_i32_0 = arith.constant 0 : i32
    %2 = arith.cmpi ne, %1, %c0_i32_0 : i32
    scf.if %2 {
      %cst_23 = arith.constant 0.000000e+00 : f32
      %30 = vector.broadcast %cst_23 : f32 to vector<1x16x128xf32>
      %c0_24 = arith.constant 0 : index
      %c0_25 = arith.constant 0 : index
      %c0_26 = arith.constant 0 : index
      %31 = vector.load %arg6[%c0_24, %c0_25, %c0_26] : memref<1x16x128xf32, #tpu.memory_space<vmem>>, vector<1x16x128xf32>
      tpu.vector_store %arg6[%c0_24, %c0_25, %c0_26], %30 {strides = array<i32>} : memref<1x16x128xf32, #tpu.memory_space<vmem>>, vector<1x16x128xf32>,
      %cst_27 = arith.constant 0.000000e+00 : f32
      %32 = vector.broadcast %cst_27 : f32 to vector<1x16x128xf32>
      %c0_28 = arith.constant 0 : index
      %c0_29 = arith.constant 0 : index
      %c0_30 = arith.constant 0 : index
      %33 = vector.load %arg7[%c0_28, %c0_29, %c0_30] : memref<1x16x128xf32, #tpu.memory_space<vmem>>, vector<1x16x128xf32>
      tpu.vector_store %arg7[%c0_28, %c0_29, %c0_30], %32 {strides = array<i32>} : memref<1x16x128xf32, #tpu.memory_space<vmem>>, vector<1x16x128xf32>,
    } else {
    }
    %c0 = arith.constant 0 : index
    %c0_1 = arith.constant 0 : index
    %3 = vector.load %arg4[%c0, %c0_1] : memref<16x4xf32, #tpu.memory_space<vmem>>, vector<16x4xf32>
    %c0_2 = arith.constant 0 : index
    %c0_3 = arith.constant 0 : index
    %c0_4 = arith.constant 0 : index
    %4 = vector.load %arg2[%c0_2, %c0_3, %c0_4] : memref<1x4x256xf32, #tpu.memory_space<vmem>>, vector<1x4x256xf32>
    %5 = vector.shape_cast %4 : vector<1x4x256xf32> to vector<4x256xf32>
    %cst = arith.constant dense<0.000000e+00> : vector<16x256xf32>
    %6 = tpu.matmul %3, %5, %cst {dimension_numbers = #tpu.dot_dimension_numbers<[1], [0], [0], [1], [0, 0, 1, 1], [], []>} : vector<16x4xf32>, vector<4x256xf32>, vector<16x256xf32> -> vector<16x256xf32>
    %c0_5 = arith.constant 0 : index
    %c0_6 = arith.constant 0 : index
    %7 = vector.load %arg5[%c0_5, %c0_6] : memref<16x4xf32, #tpu.memory_space<vmem>>, vector<16x4xf32>
    %c0_7 = arith.constant 0 : index
    %c0_8 = arith.constant 0 : index
    %c0_9 = arith.constant 0 : index
    %8 = vector.load %arg3[%c0_7, %c0_8, %c0_9] : memref<1x4x256xf32, #tpu.memory_space<vmem>>, vector<1x4x256xf32>
    %9 = vector.shape_cast %8 : vector<1x4x256xf32> to vector<4x256xf32>
    %cst_10 = arith.constant dense<0.000000e+00> : vector<16x256xf32>
    %10 = tpu.matmul %7, %9, %cst_10 {dimension_numbers = #tpu.dot_dimension_numbers<[1], [0], [0], [1], [0, 0, 1, 1], [], []>} : vector<16x4xf32>, vector<4x256xf32>, vector<16x256xf32> -> vector<16x256xf32>
    %11 = arith.addf %6, %10 : vector<16x256xf32>
    %12 = vector.extract_strided_slice %11 {offsets = [0, 0], sizes = [16, 128], strides = [1, 1]} : vector<16x256xf32> to vector<16x128xf32>
    %13 = arith.mulf %12, %12 : vector<16x128xf32>
    %14 = vector.extract_strided_slice %11 {offsets = [0, 128], sizes = [16, 128], strides = [1, 1]} : vector<16x256xf32> to vector<16x128xf32>
    %15 = arith.addf %12, %14 : vector<16x128xf32>
    %16 = arith.mulf %14, %14 : vector<16x128xf32>
    %17 = arith.addf %13, %16 : vector<16x128xf32>
    %c0_11 = arith.constant 0 : index
    %c0_12 = arith.constant 0 : index
    %c0_13 = arith.constant 0 : index
    %18 = vector.load %arg6[%c0_11, %c0_12, %c0_13] : memref<1x16x128xf32, #tpu.memory_space<vmem>>, vector<1x16x128xf32>
    %19 = vector.shape_cast %18 : vector<1x16x128xf32> to vector<16x128xf32>
    %20 = arith.addf %19, %15 : vector<16x128xf32>
    %c0_14 = arith.constant 0 : index
    %c0_15 = arith.constant 0 : index
    %c0_16 = arith.constant 0 : index
    %21 = vector.load %arg6[%c0_14, %c0_15, %c0_16] : memref<1x16x128xf32, #tpu.memory_space<vmem>>, vector<1x16x128xf32>
    %22 = vector.shape_cast %21 : vector<1x16x128xf32> to vector<16x128xf32>
    %23 = vector.shape_cast %20 : vector<16x128xf32> to vector<1x16x128xf32>
    tpu.vector_store %arg6[%c0_14, %c0_15, %c0_16], %23 {strides = array<i32>} : memref<1x16x128xf32, #tpu.memory_space<vmem>>, vector<1x16x128xf32>,
    %c0_17 = arith.constant 0 : index
    %c0_18 = arith.constant 0 : index
    %c0_19 = arith.constant 0 : index
    %24 = vector.load %arg7[%c0_17, %c0_18, %c0_19] : memref<1x16x128xf32, #tpu.memory_space<vmem>>, vector<1x16x128xf32>
    %25 = vector.shape_cast %24 : vector<1x16x128xf32> to vector<16x128xf32>
    %26 = arith.addf %25, %17 : vector<16x128xf32>
    %c0_20 = arith.constant 0 : index
    %c0_21 = arith.constant 0 : index
    %c0_22 = arith.constant 0 : index
    %27 = vector.load %arg7[%c0_20, %c0_21, %c0_22] : memref<1x16x128xf32, #tpu.memory_space<vmem>>, vector<1x16x128xf32>
    %28 = vector.shape_cast %27 : vector<1x16x128xf32> to vector<16x128xf32>
    %29 = vector.shape_cast %26 : vector<16x128xf32> to vector<1x16x128xf32>
    tpu.vector_store %arg7[%c0_20, %c0_21, %c0_22], %29 {strides = array<i32>} : memref<1x16x128xf32, #tpu.memory_space<vmem>>, vector<1x16x128xf32>,
    return
  }
  func.func @transform_0(%arg0: i32, %arg1: i32) -> (i32, i32, i32) {
    %c0_i32 = arith.constant 0 : i32
    %c0_i32_0 = arith.constant 0 : i32
    return %arg0, %c0_i32, %arg1 : i32, i32, i32
  }
  func.func @transform_1(%arg0: i32, %arg1: i32) -> (i32, i32, i32) {
    %c0_i32 = arith.constant 0 : i32
    %c0_i32_0 = arith.constant 0 : i32
    return %arg0, %c0_i32, %arg1 : i32, i32, i32
  }
  func.func @transform_2(%arg0: i32, %arg1: i32) -> (i32, i32) {
    %c0_i32 = arith.constant 0 : i32
    %c0_i32_0 = arith.constant 0 : i32
    %c0_i32_1 = arith.constant 0 : i32
    return %c0_i32, %c0_i32_0 : i32, i32
  }
  func.func @transform_3(%arg0: i32, %arg1: i32) -> (i32, i32) {
    %c0_i32 = arith.constant 0 : i32
    %c0_i32_0 = arith.constant 0 : i32
    %c0_i32_1 = arith.constant 0 : i32
    return %c0_i32, %c0_i32_0 : i32, i32
  }
  func.func @transform_4(%arg0: i32, %arg1: i32) -> (i32, i32, i32) {
    %c0_i32 = arith.constant 0 : i32
    %c0_i32_0 = arith.constant 0 : i32
    %c0_i32_1 = arith.constant 0 : i32
    return %arg0, %c0_i32, %c0_i32_0 : i32, i32, i32
  }
  func.func @transform_5(%arg0: i32, %arg1: i32) -> (i32, i32, i32) {
    %c0_i32 = arith.constant 0 : i32
    %c0_i32_0 = arith.constant 0 : i32
    %c0_i32_1 = arith.constant 0 : i32
    return %arg0, %c0_i32, %c0_i32_0 : i32, i32, i32
  }
}

</mosaic_0001>

<llo_original>
// kernel: tpu_custom_call.1
$region0: #{tpu_custom_call.1}
  #allocation0 [shape = 'u32[]', space=smem, size = 0x4, offset = 0x4, fixed_abs, tag = 'smem constant byte address 0x4 - core index']
  #allocation1 [shape = 'u32[72,128]{1,0:T(1,128)}', space=vmem, size = 0x9000, scoped, tag = 'internal scratch']
  %s0 = inlined_call_operand.vmem [shape: f32[2,4,256], index: 0, kind: input, shape index: {}]
  %s1 = inlined_call_operand.vmem [shape: f32[2,4,256], index: 1, kind: input, shape index: {}]
  %s2 = inlined_call_operand.vmem [shape: f32[16,4], index: 2, kind: input, shape index: {}]
  %s3 = inlined_call_operand.vmem [shape: f32[16,4], index: 3, kind: input, shape index: {}]
  %s4 = inlined_call_operand.hbm [shape: f32[2,16,128], index: 4, kind: output, shape index: {0}]
  %s5 = inlined_call_operand.hbm [shape: f32[2,16,128], index: 5, kind: output, shape index: {1}]
  %6 = xla_tuple %s4, %s5
  %s7 = sld [smem:[#allocation0]]
  $region61: #{tpu_custom_call.1} parent=0
    _
  %s9 = ssub.s32 1, %s7
  %s10 = scalar_select 0, %s9, %s7
  $region1: #{tpu_custom_call.1} parent=0
    #allocation2 [shape = 'u8[16384]{0}', space=vmem, size = 0x4000, scoped, tag = 'output window, operand 0']
    #allocation3 [shape = 's32[2]{0}', space=sflag, size = 0x8, scoped, tag = 'scoped memory for tpu_custom_call.1']
    #allocation4 [shape = 'u8[16384]{0}', space=vmem, size = 0x4000, scoped, tag = 'output window, operand 1']
    #allocation5 [shape = 's32[2]{0}', space=sflag, size = 0x8, scoped, tag = 'scoped memory for tpu_custom_call.1']
    %11 = vsyncpa [#allocation3], 0
    %s12 = scalar_lea.sflag [#allocation3], 1
    %13 = vsyncpa %s12, 0
    %14 = vsyncpa [#allocation5], 0
    %s15 = scalar_lea.sflag [#allocation5], 1
    %16 = vsyncpa %s15, 0
    loop: start=0, step=1, limit=4
    $region2: #{tpu_custom_call.1} parent=1 // loop_pre_header
      _
    $region3: #{tpu_custom_call.1} parent=1 // loop_header
      %s18 = sphi 0, %s22
      %p19 = scmp.ge.s32.totalorder %s18, 4
      %s25 = sphi 0, %s37
      %s26 = sphi 0, %s33
      %s27 = sphi 0, %s25
      %s28 = sphi 0, %s26
      %s29 = sphi 0, %s27
      %s30 = sphi 0, %s28
      %s42 = sphi 0, %s44
      %s45 = sphi 0, %s42
      %s46 = sphi 0, %s45
      %s62 = sphi 0, %s46
      %s70 = sphi 0, %s72
      %s73 = sphi 0, %s70
      %s74 = sphi 0, %s73
      %s90 = sphi 0, %s74
      %s94 = sphi 0, %s94
      %s96 = sphi 0, %s94
      %s97 = sphi 0, %s96
      %s111 = sphi 0, %s97
      %s115 = sphi 0, %s115
      %s117 = sphi 0, %s115
      %s118 = sphi 0, %s117
      %s132 = sphi 0, %s118
      %s138 = sphi 0, %s140
      %s141 = sphi 0, %s138
      %s142 = sphi 0, %s141
      %s158 = sphi 0, %s142
      %s164 = sphi 0, %s166
      %s167 = sphi 0, %s164
      %s168 = sphi 0, %s167
      %s184 = sphi 0, %s168
    $region4: #{tpu_custom_call.1} parent=1 // loop_header_branch
      %21 = sbr.rel (%p19) target = $region8
    $region5: #{tpu_custom_call.1} parent=1 // loop_body
      %s23 = ssub.s32 %s18, 1
      %s24 = ssub.s32 %s18, 2
      %s31 = sadd.s32 1, %s26
      %p32 = scmp.ge.s32.totalorder %s31, 1
      %s33 = scalar_select %p32, 0, %s31
      %s34 = sadd.s32 1, %s25
      %s35 = scalar_select %p32, %s34, %s25
      %p36 = scmp.ge.s32.totalorder %s35, 2
      %s37 = scalar_select %p36, 0, %s35
      %s38 = ssub.s32 %s25, %s37
      %s39 = ssub.s32 %s26, %s33
      %s40 = sor.u32 %s38, %s39
      %p41 = scmp.eq.s32.totalorder %s40, 0
      %s43 = sadd.s32 %s42, 1
      %s44 = scalar_select %p41, %s42, %s43
      %p47 = pneg %p41
      %p48 = scmp.eq.s32.totalorder %s18, 1
      %p49 = por %p47, %p48
      %p50 = scmp.ne.s32.totalorder %s42, %s45
      %p51 = scmp.eq.s32.totalorder %s18, 0
      %p52 = por %p50, %p51
      %p53 = scmp.ne.s32.totalorder %s42, %s45
      %p54 = scmp.eq.s32.totalorder %s23, 1
      %p55 = por %p53, %p54
      %p56 = scmp.ne.s32.totalorder %s45, %s46
      %p57 = scmp.eq.s32.totalorder %s23, 0
      %p58 = por %p56, %p57
      %p59 = scmp.ne.s32.totalorder %s45, %s46
      %p60 = scmp.eq.s32.totalorder %s24, 1
      %p61 = por %p59, %p60
      %p63 = scmp.ne.s32.totalorder %s46, %s62
      %p64 = scmp.eq.s32.totalorder %s24, 0
      %p65 = por %p63, %p64
      %s66 = ssub.s32 %s25, %s37
      %s67 = ssub.s32 %s26, %s33
      %s68 = sor.u32 %s66, %s67
      %p69 = scmp.eq.s32.totalorder %s68, 0
      %s71 = sadd.s32 %s70, 1
      %s72 = scalar_select %p69, %s70, %s71
      %p75 = pneg %p69
      %p76 = scmp.eq.s32.totalorder %s18, 1
      %p77 = por %p75, %p76
      %p78 = scmp.ne.s32.totalorder %s70, %s73
      %p79 = scmp.eq.s32.totalorder %s18, 0
      %p80 = por %p78, %p79
      %p81 = scmp.ne.s32.totalorder %s70, %s73
      %p82 = scmp.eq.s32.totalorder %s23, 1
      %p83 = por %p81, %p82
      %p84 = scmp.ne.s32.totalorder %s73, %s74
      %p85 = scmp.eq.s32.totalorder %s23, 0
      %p86 = por %p84, %p85
      %p87 = scmp.ne.s32.totalorder %s73, %s74
      %p88 = scmp.eq.s32.totalorder %s24, 1
      %p89 = por %p87, %p88
      %p91 = scmp.ne.s32.totalorder %s74, %s90
      %p92 = scmp.eq.s32.totalorder %s24, 0
      %p93 = por %p91, %p92
      %s95 = sadd.s32 %s94, 1
      %p98 = scmp.eq.s32.totalorder %s18, 1
      %p99 = scmp.ne.s32.totalorder %s94, %s96
      %p100 = scmp.eq.s32.totalorder %s18, 0
      %p101 = por %p99, %p100
      %p102 = scmp.ne.s32.totalorder %s94, %s96
      %p103 = scmp.eq.s32.totalorder %s23, 1
      %p104 = por %p102, %p103
      %p105 = scmp.ne.s32.totalorder %s96, %s97
      %p106 = scmp.eq.s32.totalorder %s23, 0
      %p107 = por %p105, %p106
      %p108 = scmp.ne.s32.totalorder %s96, %s97
      %p109 = scmp.eq.s32.totalorder %s24, 1
      %p110 = por %p108, %p109
      %p112 = scmp.ne.s32.totalorder %s97, %s111
      %p113 = scmp.eq.s32.totalorder %s24, 0
      %p114 = por %p112, %p113
      %s116 = sadd.s32 %s115, 1
      %p119 = scmp.eq.s32.totalorder %s18, 1
      %p120 = scmp.ne.s32.totalorder %s115, %s117
      %p121 = scmp.eq.s32.totalorder %s18, 0
      %p122 = por %p120, %p121
      %p123 = scmp.ne.s32.totalorder %s115, %s117
      %p124 = scmp.eq.s32.totalorder %s23, 1
      %p125 = por %p123, %p124
      %p126 = scmp.ne.s32.totalorder %s117, %s118
      %p127 = scmp.eq.s32.totalorder %s23, 0
      %p128 = por %p126, %p127
      %p129 = scmp.ne.s32.totalorder %s117, %s118
      %p130 = scmp.eq.s32.totalorder %s24, 1
      %p131 = por %p129, %p130
      %p133 = scmp.ne.s32.totalorder %s118, %s132
      %p134 = scmp.eq.s32.totalorder %s24, 0
      %p135 = por %p133, %p134
      %s136 = ssub.s32 %s25, %s37
      %p137 = scmp.eq.s32.totalorder %s136, 0
      %s139 = sadd.s32 %s138, 1
      %s140 = scalar_select %p137, %s138, %s139
      %p143 = pneg %p137
      %p144 = scmp.eq.s32.totalorder %s18, 1
      %p145 = por %p143, %p144
      %p146 = scmp.ne.s32.totalorder %s138, %s141
      %p147 = scmp.eq.s32.totalorder %s18, 0
      %p148 = por %p146, %p147
      %p149 = scmp.ne.s32.totalorder %s138, %s141
      %p150 = scmp.eq.s32.totalorder %s23, 1
      %p151 = por %p149, %p150
      %p152 = scmp.ne.s32.totalorder %s141, %s142
      %p153 = scmp.eq.s32.totalorder %s23, 0
      %p154 = por %p152, %p153
      %p155 = scmp.ne.s32.totalorder %s141, %s142
      %p156 = scmp.eq.s32.totalorder %s24, 1
      %p157 = por %p155, %p156
      %p159 = scmp.ne.s32.totalorder %s142, %s158
      %p160 = scmp.eq.s32.totalorder %s24, 0
      %p161 = por %p159, %p160
      %s162 = ssub.s32 %s25, %s37
      %p163 = scmp.eq.s32.totalorder %s162, 0
      %s165 = sadd.s32 %s164, 1
      %s166 = scalar_select %p163, %s164, %s165
      %p169 = pneg %p163
      %p170 = scmp.eq.s32.totalorder %s18, 1
      %p171 = por %p169, %p170
      %p172 = scmp.ne.s32.totalorder %s164, %s167
      %p173 = scmp.eq.s32.totalorder %s18, 0
      %p174 = por %p172, %p173
      %p175 = scmp.ne.s32.totalorder %s164, %s167
      %p176 = scmp.eq.s32.totalorder %s23, 1
      %p177 = por %p175, %p176
      %p178 = scmp.ne.s32.totalorder %s167, %s168
      %p179 = scmp.eq.s32.totalorder %s23, 0
      %p180 = por %p178, %p179
      %p181 = scmp.ne.s32.totalorder %s167, %s168
      %p182 = scmp.eq.s32.totalorder %s24, 1
      %p183 = por %p181, %p182
      %p185 = scmp.ne.s32.totalorder %s168, %s184
      %p186 = scmp.eq.s32.totalorder %s24, 0
      %p187 = por %p185, %p186
      %p188 = scmp.le.s32.totalorder 1, %s18
      %p189 = scmp.lt.s32.totalorder %s18, 3
      %p190 = pnand %p188, %p189
      %p191 = pneg %p190
      // Predicated region
      $region9: #{tpu_custom_call.1} parent=5 // pred_check
        _
      $region10: #{tpu_custom_call.1} parent=5 // pred_check_branch
        %193 = sbr.rel (%p190) target = $region12
      $region11: #{tpu_custom_call.1} parent=5 // pred_region
        %s194 = ssub.s32 %s18, 1
        // Predicated region
        $region13: #{tpu_custom_call.1} parent=11 // pred_check
          %p195 = pneg %p107
        $region14: #{tpu_custom_call.1} parent=11 // pred_check_branch
          %197 = sbr.rel (%p195) target = $region16
        $region15: #{tpu_custom_call.1} parent=11 // pred_region
          _
        $region16: #{tpu_custom_call.1} parent=11 // pred_fallthru
          _
        // Predicated region
        $region17: #{tpu_custom_call.1} parent=11 // pred_check
          %p198 = pneg %p128
        $region18: #{tpu_custom_call.1} parent=11 // pred_check_branch
          %200 = sbr.rel (%p198) target = $region20
        $region19: #{tpu_custom_call.1} parent=11 // pred_region
          _
        $region20: #{tpu_custom_call.1} parent=11 // pred_fallthru
          _
      $region12: #{tpu_custom_call.1} parent=5 // pred_fallthru
        _
      %p201 = scmp.lt.s32.totalorder %s18, 2
      // Predicated region
      $region21: #{tpu_custom_call.1} parent=5 // pred_check
        %p202 = pneg %p201
      $region22: #{tpu_custom_call.1} parent=5 // pred_check_branch
        %204 = sbr.rel (%p202) target = $region24
      $region23: #{tpu_custom_call.1} parent=5 // pred_region
        // Predicated region
        $region25: #{tpu_custom_call.1} parent=23 // pred_check
          %p205 = pneg %p52
        $region26: #{tpu_custom_call.1} parent=23 // pred_check_branch
          %207 = sbr.rel (%p205) target = $region28
        $region27: #{tpu_custom_call.1} parent=23 // pred_region
          %s208 = smul.u32 2, %s26
          %p209 = scmp.lt.s32.totalorder %s25, 1
          %s210 = scalar_select %p209, %s25, 1
          %p211 = scmp.lt.s32.totalorder %s208, 1
          %s212 = scalar_select %p211, %s208, 1
          %s213 = smul.addr %s210, 2
          %s214 = sadd.s32 %s212, %s213
          %s215 = smul.addr %s214, 4
          %s216 = scalar_lea.vmem %s0, %s215
          %s217 = smul.u32 2, %s26
        $region28: #{tpu_custom_call.1} parent=23 // pred_fallthru
          _
        // Predicated region
        $region29: #{tpu_custom_call.1} parent=23 // pred_check
          %p218 = pneg %p80
        $region30: #{tpu_custom_call.1} parent=23 // pred_check_branch
          %220 = sbr.rel (%p218) target = $region32
        $region31: #{tpu_custom_call.1} parent=23 // pred_region
          %s221 = smul.u32 2, %s26
          %p222 = scmp.lt.s32.totalorder %s25, 1
          %s223 = scalar_select %p222, %s25, 1
          %p224 = scmp.lt.s32.totalorder %s221, 1
          %s225 = scalar_select %p224, %s221, 1
          %s226 = smul.addr %s223, 2
          %s227 = sadd.s32 %s225, %s226
          %s228 = smul.addr %s227, 4
          %s229 = scalar_lea.vmem %s1, %s228
          %s230 = smul.u32 2, %s26
        $region32: #{tpu_custom_call.1} parent=23 // pred_fallthru
          _
      $region24: #{tpu_custom_call.1} parent=5 // pred_fallthru
        _
      %p231 = scmp.le.s32.totalorder 1, %s18
      %p232 = scmp.lt.s32.totalorder %s18, 3
      %p233 = pnand %p231, %p232
      %p234 = pneg %p233
      // Predicated region
      $region33: #{tpu_custom_call.1} parent=5 // pred_check
        _
      $region34: #{tpu_custom_call.1} parent=5 // pred_check_branch
        %236 = sbr.rel (%p233) target = $region36
      $region35: #{tpu_custom_call.1} parent=5 // pred_region
        %s237 = ssub.s32 %s18, 1
        %s238 = smul.u32 2, %s28
        %p239 = scmp.lt.s32.totalorder %s27, 1
        %s240 = scalar_select %p239, %s27, 1
        %p241 = scmp.lt.s32.totalorder %s238, 1
        %s242 = scalar_select %p241, %s238, 1
        %s243 = smul.addr %s240, 2
        %s244 = sadd.s32 %s242, %s243
        %s245 = smul.addr %s244, 4
        %s246 = scalar_lea.vmem %s0, %s245
        %p247 = pneg %p58
        %p248 = pneg %p55
        %s249 = smul.u32 2, %s28
        %p250 = scmp.lt.s32.totalorder %s27, 1
        %s251 = scalar_select %p250, %s27, 1
        %p252 = scmp.lt.s32.totalorder %s249, 1
        %s253 = scalar_select %p252, %s249, 1
        %s254 = smul.addr %s251, 2
        %s255 = sadd.s32 %s253, %s254
        %s256 = smul.addr %s255, 4
        %s257 = scalar_lea.vmem %s1, %s256
        %p258 = pneg %p86
        %p259 = pneg %p83
        %p260 = pneg %p107
        %p261 = pneg %p104
        %p262 = pneg %p128
        %p263 = pneg %p125
        %p264 = pneg %p154
        %p265 = pneg %p151
        %s266 = sand.u32 %s141, 1
        %s267 = scalar_lea.sflag [#allocation3], %s266
        %s268 = sand.u32 %s141, 1
        %s269 = smul.addr %s268, 16
        %s270 = scalar_lea.vmem [#allocation2], %s269
        %p271 = pneg %p180
        %p272 = pneg %p177
        %s273 = sand.u32 %s167, 1
        %s274 = scalar_lea.sflag [#allocation5], %s273
        %s275 = sand.u32 %s167, 1
        %s276 = smul.addr %s275, 16
        %s277 = scalar_lea.vmem [#allocation4], %s276
        %s278 = smul.u32 2, %s28
        %p279 = scmp.lt.s32.totalorder %s27, 1
        %s280 = scalar_select %p279, %s27, 1
        %p281 = scmp.lt.s32.totalorder %s278, 1
        %s282 = scalar_select %p281, %s278, 1
        %s283 = smul.addr %s280, 2
        %s284 = sadd.s32 %s282, %s283
        %s285 = smul.addr %s284, 4
        %s286 = scalar_lea.vmem %s0, %s285
        %s287 = smul.u32 2, %s28
        %s288 = smul.u32 2, %s28
        %p289 = scmp.lt.s32.totalorder %s27, 1
        %s290 = scalar_select %p289, %s27, 1
        %p291 = scmp.lt.s32.totalorder %s288, 1
        %s292 = scalar_select %p291, %s288, 1
        %s293 = smul.addr %s290, 2
        %s294 = sadd.s32 %s292, %s293
        %s295 = smul.addr %s294, 4
        %s296 = scalar_lea.vmem %s1, %s295
        %s297 = smul.u32 2, %s28
        %p298 = scmp.eq.s32.totalorder %s28, 0
        // Predicated region
        $region37: #{tpu_custom_call.1} parent=35 // pred_check
          %p299 = pneg %p298
        $region38: #{tpu_custom_call.1} parent=35 // pred_check_branch
          %301 = sbr.rel (%p299) target = $region40
        $region39: #{tpu_custom_call.1} parent=35 // pred_region
          %302 = vst [vmem:[%s270] sm:$0xff] 0.0
          %303 = vst [vmem:[%s270 + $0x8] sm:$0xff] 0.0
          %304 = vst [vmem:[%s277] sm:$0xff] 0.0
          %305 = vst [vmem:[%s277 + $0x8] sm:$0xff] 0.0
        $region40: #{tpu_custom_call.1} parent=35 // pred_fallthru
          _
        %v306 = vld [vmem:[%s2] sm:$0xff]
        %v307 = vld [vmem:[%s2 + $0x8] sm:$0xff]
        %v308 = vld [vmem:[%s286] sm:$0xff]
        %v309 = vld [vmem:[%s3] sm:$0xff]
        %v310 = vld [vmem:[%s3 + $0x8] sm:$0xff]
        %v311 = vld [vmem:[%s296] sm:$0xff]
        %313 = vst [vmem:[#allocation1] ss:$2 sm:$0xff] %v311
        %v314 = vld.sshfl [vmem:[#allocation1] sm:$0xff pattern:$0x75316420]
        %v315 = vld.sshfl [vmem:[#allocation1 + $0x8] sm:$0xff pattern:$0x75316420]
        %vm316 = vcmask 31744
        %v318 = vsel %vm316, %v309, 0
        %v321 = vsel %vm316, %v310, 0
        %vm323 = vcmask 1043456
        %v324 = vsel %vm323, %v314, 0
        %v326 = vsel %vm323, %v315, 0
        %328 = vmatpush.msra.mxu0 0.0
        %329 = vmatpush.msra.mxu0 0.0
        %330 = vmatpush.msra.mxu0 0.0
        %331 = vmatpush.msra.mxu0 0.0
        %332 = vmatpush.msra.mxu0 0.0
        %333 = vmatpush.msra.mxu0 0.0
        %334 = vmatpush.msra.mxu0 0.0
        %335 = vmatpush.msra.mxu0 0.0
        %336 = vmatpush.msra.mxu0 0.0
        %337 = vmatpush.msra.mxu0 0.0
        %338 = vmatpush.msra.mxu0 0.0
        %339 = vmatpush.msra.mxu0 0.0
        %340 = vmatpush.msra.mxu0 0.0
        %341 = vmatpush.msra.mxu0 0.0
        %342 = vmatpush.msra.mxu0 0.0
        %343 = vmatpush.msra.mxu0 %v324
        %344 = vmatmul.f32.gmra.mxu0 %v318
        %v345 = vpop.f32.mrf.mxu0
        %v346 = vadd.f32 0.0, %v345
        %347 = vmatmul.f32.gmra.mxu0 %v321
        %v348 = vpop.f32.mrf.mxu0
        %v349 = vadd.f32 0.0, %v348
        %350 = vdwg.mxu0
        %351 = vmatpush.msra.mxu0 0.0
        %352 = vmatpush.msra.mxu0 0.0
        %353 = vmatpush.msra.mxu0 0.0
        %354 = vmatpush.msra.mxu0 0.0
        %355 = vmatpush.msra.mxu0 0.0
        %356 = vmatpush.msra.mxu0 0.0
        %357 = vmatpush.msra.mxu0 0.0
        %358 = vmatpush.msra.mxu0 0.0
        %359 = vmatpush.msra.mxu0 0.0
        %360 = vmatpush.msra.mxu0 0.0
        %361 = vmatpush.msra.mxu0 0.0
        %362 = vmatpush.msra.mxu0 0.0
        %363 = vmatpush.msra.mxu0 0.0
        %364 = vmatpush.msra.mxu0 0.0
        %365 = vmatpush.msra.mxu0 0.0
        %366 = vmatpush.msra.mxu0 %v326
        %367 = vmatmul.f32.gmra.mxu0 %v318
        %v368 = vpop.f32.mrf.mxu0
        %v369 = vadd.f32 0.0, %v368
        %370 = vmatmul.f32.gmra.mxu0 %v321
        %v371 = vpop.f32.mrf.mxu0
        %v372 = vadd.f32 0.0, %v371
        %373 = vdwg.mxu0
        %375 = vst [vmem:[#allocation1] ss:$2 sm:$0xff] %v308
        %v376 = vld.sshfl [vmem:[#allocation1] sm:$0xff pattern:$0x75316420]
        %v377 = vld.sshfl [vmem:[#allocation1 + $0x8] sm:$0xff pattern:$0x75316420]
        %v379 = vsel %vm316, %v306, 0
        %v382 = vsel %vm316, %v307, 0
        %v384 = vsel %vm323, %v376, 0
        %v386 = vsel %vm323, %v377, 0
        %388 = vmatpush.msra.mxu0 0.0
        %389 = vmatpush.msra.mxu0 0.0
        %390 = vmatpush.msra.mxu0 0.0
        %391 = vmatpush.msra.mxu0 0.0
        %392 = vmatpush.msra.mxu0 0.0
        %393 = vmatpush.msra.mxu0 0.0
        %394 = vmatpush.msra.mxu0 0.0
        %395 = vmatpush.msra.mxu0 0.0
        %396 = vmatpush.msra.mxu0 0.0
        %397 = vmatpush.msra.mxu0 0.0
        %398 = vmatpush.msra.mxu0 0.0
        %399 = vmatpush.msra.mxu0 0.0
        %400 = vmatpush.msra.mxu0 0.0
        %401 = vmatpush.msra.mxu0 0.0
        %402 = vmatpush.msra.mxu0 0.0
        %403 = vmatpush.msra.mxu0 %v384
        %404 = vmatmul.f32.gmra.mxu0 %v379
        %v405 = vpop.f32.mrf.mxu0
        %v406 = vadd.f32 %v346, %v405
        %407 = vmatmul.f32.gmra.mxu0 %v382
        %v408 = vpop.f32.mrf.mxu0
        %v409 = vadd.f32 %v349, %v408
        %410 = vdwg.mxu0
        %411 = vmatpush.msra.mxu0 0.0
        %412 = vmatpush.msra.mxu0 0.0
        %413 = vmatpush.msra.mxu0 0.0
        %414 = vmatpush.msra.mxu0 0.0
        %415 = vmatpush.msra.mxu0 0.0
        %416 = vmatpush.msra.mxu0 0.0
        %417 = vmatpush.msra.mxu0 0.0
        %418 = vmatpush.msra.mxu0 0.0
        %419 = vmatpush.msra.mxu0 0.0
        %420 = vmatpush.msra.mxu0 0.0
        %421 = vmatpush.msra.mxu0 0.0
        %422 = vmatpush.msra.mxu0 0.0
        %423 = vmatpush.msra.mxu0 0.0
        %424 = vmatpush.msra.mxu0 0.0
        %425 = vmatpush.msra.mxu0 0.0
        %426 = vmatpush.msra.mxu0 %v386
        %427 = vmatmul.f32.gmra.mxu0 %v379
        %v428 = vpop.f32.mrf.mxu0
        %v429 = vadd.f32 %v369, %v428
        %430 = vmatmul.f32.gmra.mxu0 %v382
        %v431 = vpop.f32.mrf.mxu0
        %v432 = vadd.f32 %v372, %v431
        %433 = vdwg.mxu0
        %v434 = vmul.f32 %v406, %v406
        %v435 = vmul.f32 %v409, %v409
        %v436 = vadd.f32 %v406, %v429
        %v437 = vadd.f32 %v409, %v432
        %v438 = vmul.f32 %v429, %v429
        %v439 = vmul.f32 %v432, %v432
        %v440 = vadd.f32 %v434, %v438
        %v441 = vadd.f32 %v435, %v439
        %v442 = vld [vmem:[%s270] sm:$0xff]
        %v443 = vld [vmem:[%s270 + $0x8] sm:$0xff]
        %v444 = vadd.f32 %v442, %v436
        %v445 = vadd.f32 %v443, %v437
        %446 = vst [vmem:[%s270] sm:$0xff] %v444
        %447 = vst [vmem:[%s270 + $0x8] sm:$0xff] %v445
        %v448 = vld [vmem:[%s277] sm:$0xff]
        %v449 = vld [vmem:[%s277 + $0x8] sm:$0xff]
        %v450 = vadd.f32 %v448, %v440
        %v451 = vadd.f32 %v449, %v441
        %452 = vst [vmem:[%s277] sm:$0xff] %v450
        %453 = vst [vmem:[%s277 + $0x8] sm:$0xff] %v451
        %s454 = sand.u32 %s141, 1
        %s455 = scalar_lea.sflag [#allocation3], %s454
        %s456 = sand.u32 %s141, 1
        %s457 = smul.addr %s456, 16
        %s458 = scalar_lea.vmem [#allocation2], %s457
        %s459 = sand.u32 %s167, 1
        %s460 = scalar_lea.sflag [#allocation5], %s459
        %s461 = sand.u32 %s167, 1
        %s462 = smul.addr %s461, 16
        %s463 = scalar_lea.vmem [#allocation4], %s462
        // Predicated region
        $region41: #{tpu_custom_call.1} parent=35 // pred_check
          %p464 = pneg %p151
        $region42: #{tpu_custom_call.1} parent=35 // pred_check_branch
          %466 = sbr.rel (%p464) target = $region44
        $region43: #{tpu_custom_call.1} parent=35 // pred_region
          %468 = vsyncadd %s455, 0
          %s469 = smul.addr %s27, 2
          %s470 = smul.addr %s469, 8
          %s471 = scalar_lea.hbm %s4, %s470
          %s472 = sshll.u32 %s458, 4
          %s473 = int_to_ptr.vmem [resolvable:$true] %s472
          %s474 = sshll.u32 %s471, 4
          %s475 = int_to_ptr.hbm [resolvable:$true] %s474
          %480 = dma.vmem_to_hbm [thread:$0]  %s473, 256, %s475, %s455, 128, 128, 8
        $region44: #{tpu_custom_call.1} parent=35 // pred_fallthru
          _
        // Predicated region
        $region45: #{tpu_custom_call.1} parent=35 // pred_check
          %p481 = pneg %p177
        $region46: #{tpu_custom_call.1} parent=35 // pred_check_branch
          %483 = sbr.rel (%p481) target = $region48
        $region47: #{tpu_custom_call.1} parent=35 // pred_region
          %485 = vsyncadd %s460, 0
          %s486 = smul.addr %s27, 2
          %s487 = smul.addr %s486, 8
          %s488 = scalar_lea.hbm %s5, %s487
          %s489 = sshll.u32 %s463, 4
          %s490 = int_to_ptr.vmem [resolvable:$true] %s489
          %s491 = sshll.u32 %s488, 4
          %s492 = int_to_ptr.hbm [resolvable:$true] %s491
          %497 = dma.vmem_to_hbm [thread:$0]  %s490, 256, %s492, %s460, 128, 128, 8
        $region48: #{tpu_custom_call.1} parent=35 // pred_fallthru
          _
      $region36: #{tpu_custom_call.1} parent=5 // pred_fallthru
        _
      %p498 = scmp.le.s32.totalorder 2, %s18
      // Predicated region
      $region49: #{tpu_custom_call.1} parent=5 // pred_check
        %p499 = pneg %p498
      $region50: #{tpu_custom_call.1} parent=5 // pred_check_branch
        %501 = sbr.rel (%p499) target = $region52
      $region51: #{tpu_custom_call.1} parent=5 // pred_region
        %s502 = ssub.s32 %s18, 2
        // Predicated region
        $region53: #{tpu_custom_call.1} parent=51 // pred_check
          %p503 = pneg %p157
        $region54: #{tpu_custom_call.1} parent=51 // pred_check_branch
          %505 = sbr.rel (%p503) target = $region56
        $region55: #{tpu_custom_call.1} parent=51 // pred_region
          %s506 = sand.u32 %s142, 1
          %s507 = scalar_lea.sflag [#allocation3], %s506
          %s508 = sand.u32 %s142, 1
          %s509 = smul.addr %s508, 16
          %s510 = scalar_lea.vmem [#allocation2], %s509
          %512 = dma.done %s507, 256
        $region56: #{tpu_custom_call.1} parent=51 // pred_fallthru
          _
        // Predicated region
        $region57: #{tpu_custom_call.1} parent=51 // pred_check
          %p513 = pneg %p183
        $region58: #{tpu_custom_call.1} parent=51 // pred_check_branch
          %515 = sbr.rel (%p513) target = $region60
        $region59: #{tpu_custom_call.1} parent=51 // pred_region
          %s516 = sand.u32 %s168, 1
          %s517 = scalar_lea.sflag [#allocation5], %s516
          %s518 = sand.u32 %s168, 1
          %s519 = smul.addr %s518, 16
          %s520 = scalar_lea.vmem [#allocation4], %s519
          %522 = dma.done %s517, 256
        $region60: #{tpu_custom_call.1} parent=51 // pred_fallthru
          _
      $region52: #{tpu_custom_call.1} parent=5 // pred_fallthru
        _
    $region6: #{tpu_custom_call.1} parent=1 // loop_footer
      %s22 = sadd.s32 1, %s18
    $region7: #{tpu_custom_call.1} parent=1 // loop_footer_branch
      %17 = sbr.rel target = $region3
    $region8: #{tpu_custom_call.1} parent=1 // loop_exit
      _
    %523 = vsyncpa [#allocation3], 1
    %s524 = scalar_lea.sflag [#allocation3], 1
    %525 = vsyncpa %s524, 1
    %526 = vsyncpa [#allocation5], 1
    %s527 = scalar_lea.sflag [#allocation5], 1
    %528 = vsyncpa %s527, 1

</llo_original>
